<compile_context>
chip_gen: v5e
topology: v5e:2x2
jax: 0.10.0
libtpu: 0.0.40
codegen_flags: <defaults>
</compile_context>

<pallas_src>
import jax
import jax.numpy as jnp
from jax.experimental import pallas as pl
from jax.experimental.pallas import tpu as pltpu


_FLOPS_PER_ELEM = 19  # approximate fused op count per element (advisory only)


def _newact_math(x):
    """Fused NewAct math on a float32 array (used by the kernel body and the tail path)."""
    # --- QuantizeActivation a: clamp_values=(-4.0, None) -> clamp min only ---
    xa = jnp.maximum(x, jnp.float32(-4.0))

    # --- SigmoidApproximationActivation (exact fixed-point 4.12 arithmetic) ---
    # x_clipped = clamp(xa, -4, 4); xa >= -4 already, so only the upper clamp is needed.
    x_clipped = jnp.minimum(xa, jnp.float32(4.0))
    # float_to_fixed: round(x * 4096) -> int32   (round-half-to-even, same as torch.round)
    x_fixed = jnp.round(x_clipped * jnp.float32(4096.0)).astype(jnp.int32)
    # where(x_clipped <= 0, -x_fixed, x_fixed)  ==  abs(x_fixed)  (signs agree)
    z_fixed = jnp.abs(x_fixed)
    z = (z_fixed >> 2) - 4096
    # z*z is non-negative and < 2^25, so (>>12)>>1 == >>13 exactly.
    y_approx_fixed = (z * z) >> 13
    y_fixed = jnp.where(x_clipped <= 0.0, y_approx_fixed, 4096 - y_approx_fixed)
    # 2^-12 scaling is exact in f32; folding it onto x_clipped is bit-identical to
    # (y_fixed/4096) * x_clipped but saves the intermediate.
    y_approx_x = y_fixed.astype(jnp.float32) * (x_clipped * jnp.float32(1.0 / 4096.0))
    y = jnp.where(xa > 4.0, xa, y_approx_x)

    # --- QuantizeActivation c: clamp_values=(None, None) -> pass-through ---
    return y


def _newact_kernel(x_ref, o_ref):
    # Non-dividing edge blocks read Pallas-padded garbage through the int32
    # round/shift path; that is numerically safe (no traps) and the writeback is
    # masked by Pallas — do NOT "fix" this with a host-side pad.
    o_ref[...] = _newact_math(x_ref[...])


def _run_kernel_2d(x2d):
    """Run the fused kernel on a lane-dense (rows, lanes) float32 slab."""
    rows, lanes = x2d.shape

    # ~2 MiB f32 per block; with input+output double-buffered that is ~8 MiB VMEM,
    # under v5e's 16 MiB scoped default and far under v6e/v7x limits.
    TARGET_BLOCK_ELEMS = 512 * 1024
    target_rows = max(8, TARGET_BLOCK_ELEMS // lanes)

    if rows <= target_rows:
        row_tile = rows                      # full-extent block (always legal)
    else:
        steps = pl.cdiv(rows, target_rows)
        steps += steps % 2                   # even step count -> balanced v7x 2-TC split
        row_tile = ((pl.cdiv(rows, steps) + 7) // 8) * 8
    grid = (pl.cdiv(rows, row_tile),)        # non-dividing edge block is masked by Pallas

    n_elems = rows * lanes
    cost = pl.CostEstimate(
        flops=_FLOPS_PER_ELEM * n_elems,
        transcendentals=0,
        bytes_accessed=2 * n_elems * 4,      # one read + one write pass over HBM
    )

    return pl.pallas_call(
        _newact_kernel,
        out_shape=jax.ShapeDtypeStruct((rows, lanes), jnp.float32),
        grid=grid,
        in_specs=[pl.BlockSpec((row_tile, lanes), lambda i: (i, 0))],
        out_specs=pl.BlockSpec((row_tile, lanes), lambda i: (i, 0)),
        compiler_params=pltpu.CompilerParams(
            dimension_semantics=("parallel",),
            vmem_limit_bytes=32 * 1024 * 1024,
        ),
        cost_estimate=cost,
    )(x2d)


def new_act(x):
    """x: float32 NCHW tensor. Returns NewAct(x) with the same shape/dtype."""
    orig_shape = x.shape
    n = x.size
    x = x.astype(jnp.float32)

    # Widest lane-dense slab that divides n (prefer >= 8 sublane rows for full vregs).
    lanes = None
    for cand in (1024, 512, 256, 128):
        if n % cand == 0 and n // cand >= 8:
            lanes = cand
            break
    if lanes is None and n % 128 == 0:
        lanes = 128                          # tiny but 128-divisible input

    if lanes is not None:
        out2d = _run_kernel_2d(x.reshape(-1, lanes))   # free reshape, no HBM copy
        return out2d.reshape(orig_shape)

    # Awkward sizes: kernel on the 128-divisible prefix, <128-element tail in plain
    # jnp.  Avoids the old full-tensor pad (extra HBM read+write) + output slice.
    flat = x.reshape(-1)
    n_main = (n // 128) * 128
    if n_main == 0:
        return _newact_math(flat).reshape(orig_shape)  # < 128 elements total
    out_main = _run_kernel_2d(flat[:n_main].reshape(-1, 128)).reshape(-1)
    out_tail = _newact_math(flat[n_main:])
    return jnp.concatenate([out_main, out_tail]).reshape(orig_shape)


def _new_act_ref(x):
    """Pure-JAX reference of the original (unfused) torch math, for a sanity check."""
    xa = jnp.maximum(x, -4.0)
    y = jnp.where(xa > 4.0, xa, 0.0)
    x_clipped = jnp.clip(xa, -4.0, 4.0)
    x_fixed = jnp.round(x_clipped * 4096.0).astype(jnp.int32)
    z_fixed = jnp.where(x_clipped <= 0.0, -x_fixed, x_fixed)
    z = (z_fixed >> 2) - 4096
    y_approx_fixed = ((z * z) >> 12) >> 1
    y_fixed = jnp.where(x_clipped <= 0.0, y_approx_fixed, 4096 - y_approx_fixed)
    y_approx = y_fixed.astype(jnp.float32) / 4096.0
    return y + jnp.where(xa > 4.0, 0.0, y_approx * x_clipped)


if __name__ == "__main__":
    key = jax.random.PRNGKey(0)
    # Small NCHW input spanning the interesting range of the activation.
    x = jax.random.normal(key, (2, 4, 16, 16), dtype=jnp.float32) * 10.0

    out = new_act(x)
    out = jax.block_until_ready(out)

    ref = _new_act_ref(x)
    assert out.shape == x.shape and out.dtype == jnp.float32
    assert jnp.allclose(out, ref, atol=1e-6, rtol=1e-6)

    print("KERNEL_OK")
</pallas_src>

<mosaic_0001>
module attributes {stable_mosaic.version = 11 : i64} {
  func.func @_newact_kernel(%arg0: i32, %arg1: memref<8x256xf32, #tpu.memory_space<vmem>>, %arg2: memref<8x256xf32, #tpu.memory_space<vmem>>) attributes {dimension_semantics = [#tpu.dimension_semantics<parallel>], iteration_bounds = array<i64: 1>, scalar_prefetch = 0 : i64, scratch_operands = 0 : i64, tpu.core_type = #tpu.core_type<tc>, window_params = [{transform_indices = @transform_0, window_bounds = array<i64: 8, 256>}, {transform_indices = @transform_1, window_bounds = array<i64: 8, 256>}]} {
    %c0 = arith.constant 0 : index
    %c0_0 = arith.constant 0 : index
    %0 = vector.load %arg1[%c0, %c0_0] : memref<8x256xf32, #tpu.memory_space<vmem>>, vector<8x256xf32>
    %cst = arith.constant -4.000000e+00 : f32
    %1 = vector.broadcast %cst : f32 to vector<8x256xf32>
    %2 = arith.maximumf %0, %1 : vector<8x256xf32>
    %cst_1 = arith.constant 4.000000e+00 : f32
    %3 = vector.broadcast %cst_1 : f32 to vector<8x256xf32>
    %4 = arith.minimumf %2, %3 : vector<8x256xf32>
    %cst_2 = arith.constant 4.096000e+03 : f32
    %5 = vector.broadcast %cst_2 : f32 to vector<8x256xf32>
    %6 = arith.mulf %4, %5 : vector<8x256xf32>
    %7 = math.roundeven %6 : vector<8x256xf32>
    %8 = arith.fptosi %7 : vector<8x256xf32> to vector<8x256xi32>
    %9 = math.absi %8 : vector<8x256xi32>
    %c2_i32 = arith.constant 2 : i32
    %10 = vector.broadcast %c2_i32 : i32 to vector<8x256xi32>
    %11 = arith.shrsi %9, %10 : vector<8x256xi32>
    %c4096_i32 = arith.constant 4096 : i32
    %12 = vector.broadcast %c4096_i32 : i32 to vector<8x256xi32>
    %13 = arith.subi %11, %12 : vector<8x256xi32>
    %14 = arith.muli %13, %13 : vector<8x256xi32>
    %c13_i32 = arith.constant 13 : i32
    %15 = vector.broadcast %c13_i32 : i32 to vector<8x256xi32>
    %16 = arith.shrsi %14, %15 : vector<8x256xi32>
    %cst_3 = arith.constant 0.000000e+00 : f32
    %17 = vector.broadcast %cst_3 : f32 to vector<8x256xf32>
    %18 = arith.cmpf ole, %4, %17 : vector<8x256xf32>
    %c4096_i32_4 = arith.constant 4096 : i32
    %19 = vector.broadcast %c4096_i32_4 : i32 to vector<8x256xi32>
    %20 = arith.subi %19, %16 : vector<8x256xi32>
    %21 = arith.select %18, %16, %20 : vector<8x256xi1>, vector<8x256xi32>
    %22 = arith.sitofp %21 : vector<8x256xi32> to vector<8x256xf32>
    %cst_5 = arith.constant 2.44140625E-4 : f32
    %23 = vector.broadcast %cst_5 : f32 to vector<8x256xf32>
    %24 = arith.mulf %4, %23 : vector<8x256xf32>
    %25 = arith.mulf %22, %24 : vector<8x256xf32>
    %cst_6 = arith.constant 4.000000e+00 : f32
    %26 = vector.broadcast %cst_6 : f32 to vector<8x256xf32>
    %27 = arith.cmpf ogt, %2, %26 : vector<8x256xf32>
    %28 = arith.select %27, %2, %25 : vector<8x256xi1>, vector<8x256xf32>
    %c0_7 = arith.constant 0 : index
    %c0_8 = arith.constant 0 : index
    %29 = vector.load %arg2[%c0_7, %c0_8] : memref<8x256xf32, #tpu.memory_space<vmem>>, vector<8x256xf32>
    tpu.vector_store %arg2[%c0_7, %c0_8], %28 {strides = array<i32>} : memref<8x256xf32, #tpu.memory_space<vmem>>, vector<8x256xf32>,
    return
  }
  func.func @transform_0(%arg0: i32) -> (i32, i32) {
    %c0_i32 = arith.constant 0 : i32
    %c0_i32_0 = arith.constant 0 : i32
    return %arg0, %c0_i32 : i32, i32
  }
  func.func @transform_1(%arg0: i32) -> (i32, i32) {
    %c0_i32 = arith.constant 0 : i32
    %c0_i32_0 = arith.constant 0 : i32
    return %arg0, %c0_i32 : i32, i32
  }
}

</mosaic_0001>

<llo_original>
// kernel: tpu_custom_call.1
$region0: #{tpu_custom_call.1}
  #allocation0 [shape = 'u32[]', space=smem, size = 0x4, offset = 0x4, fixed_abs, tag = 'smem constant byte address 0x4 - core index']
  #allocation1 [shape = 'u32[72,128]{1,0:T(1,128)}', space=vmem, size = 0x9000, scoped, tag = 'internal scratch']
  %s0 = inlined_call_operand.hbm [shape: f32[8,256], index: 0, kind: input, shape index: {}]
  %s1 = inlined_call_operand.hbm [shape: f32[8,256], index: 1, kind: output, shape index: {}]
  %s2 = sld [smem:[#allocation0]]
  $region18: #{tpu_custom_call.1} parent=0
    _
  %s4 = ssub.s32 1, %s2
  %s5 = scalar_select 0, %s4, %s2
  $region1: #{tpu_custom_call.1} parent=0
    #allocation2 [shape = 'u8[8192]{0}', space=vmem, size = 0x2000, scoped, tag = 'input window, operand 0, single buffered']
    #allocation3 [shape = 's32[1]{0}', space=sflag, size = 0x4, scoped, tag = 'scoped memory for tpu_custom_call.1']
    #allocation4 [shape = 's32[1]{0}', space=sflag, size = 0x4, scoped, tag = 'scoped memory for tpu_custom_call.1']
    #allocation5 [shape = 'u8[8192]{0}', space=vmem, size = 0x2000, scoped, tag = 'output window, operand 0, single buffered']
    %6 = vsyncpa [#allocation3], 0
    %7 = vsyncpa [#allocation4], 0
    // Predicated region
    $region2: #{tpu_custom_call.1} parent=1 // pred_check
      _
    $region3: #{tpu_custom_call.1} parent=1 // pred_check_branch
      %9 = sbr.rel (0) target = $region5
    $region4: #{tpu_custom_call.1} parent=1 // pred_region
      %11 = vsyncadd [#allocation3], 0
      %s13 = sshll.u32 %s0, 4
      %s14 = int_to_ptr.hbm [resolvable:$true] %s13
      %s15 = sshll.u32 [#allocation2], 4
      %s16 = int_to_ptr.vmem [resolvable:$true] %s15
      %18 = dma.hbm_to_vmem [thread:$0]  %s14, 256, %s16, [#allocation3]
    $region5: #{tpu_custom_call.1} parent=1 // pred_fallthru
      _
    // Predicated region
    $region6: #{tpu_custom_call.1} parent=1 // pred_check
      _
    $region7: #{tpu_custom_call.1} parent=1 // pred_check_branch
      %20 = sbr.rel (0) target = $region9
    $region8: #{tpu_custom_call.1} parent=1 // pred_region
      %22 = dma.done [#allocation3], 256
    $region9: #{tpu_custom_call.1} parent=1 // pred_fallthru
      _
    %v23 = vld [vmem:[#allocation2] sm:$0xff]
    %v24 = vld [vmem:[#allocation2 + $0x8] sm:$0xff]
    %v25 = vmax.f32 %v23, -4.0
    %v26 = vmax.f32 %v24, -4.0
    %v27 = vmin.f32 %v25, 4.0
    %v28 = vmin.f32 %v26, 4.0
    %v29 = vmul.f32 %v27, 4096.0
    %v30 = vmul.f32 %v28, 4096.0
    %v31 = vcvt.f32.s32.ties.to.even %v29
    %v32 = vcvt.f32.s32.ties.to.even %v30
    %vm33 = vcmp.lt.s32.totalorder %v31, 0
    %v34 = vsub.s32 0, %v31
    %v35 = vsel %vm33, %v34, %v31
    %vm36 = vcmp.lt.s32.totalorder %v32, 0
    %v37 = vsub.s32 0, %v32
    %v38 = vsel %vm36, %v37, %v32
    %v39 = vshra.s32 %v35, 2
    %v40 = vshra.s32 %v38, 2
    %v41 = vsub.s32 %v39, 4096
    %v42 = vsub.s32 %v40, 4096
    %v43 = vmul.u32 %v41, %v41
    %v44 = vmul.u32 %v42, %v42
    %v45 = vshra.s32 %v43, 13
    %v46 = vshra.s32 %v44, 13
    %vm47 = vcmp.le.f32.partialorder %v27, 0.0
    %vm48 = vcmp.le.f32.partialorder %v28, 0.0
    %v49 = vsub.s32 4096, %v45
    %v50 = vsub.s32 4096, %v46
    %v51 = vsel %vm47, %v45, %v49
    %v52 = vsel %vm48, %v46, %v50
    %v53 = vcvt.s32.f32 %v51
    %v54 = vcvt.s32.f32 %v52
    %v55 = vmul.f32 %v27, 0.00024414063
    %v56 = vmul.f32 %v28, 0.00024414063
    %v57 = vmul.f32 %v53, %v55
    %v58 = vmul.f32 %v54, %v56
    %vm59 = vcmp.gt.f32.partialorder %v25, 4.0
    %vm60 = vcmp.gt.f32.partialorder %v26, 4.0
    %v61 = vsel %vm59, %v25, %v57
    %v62 = vsel %vm60, %v26, %v58
    %63 = vst [vmem:[#allocation5] sm:$0xff] %v61
    %64 = vst [vmem:[#allocation5 + $0x8] sm:$0xff] %v62
    // Predicated region
    $region10: #{tpu_custom_call.1} parent=1 // pred_check
      _
    $region11: #{tpu_custom_call.1} parent=1 // pred_check_branch
      %66 = sbr.rel (0) target = $region13
    $region12: #{tpu_custom_call.1} parent=1 // pred_region
      %68 = vsyncadd [#allocation4], 0
      %s70 = sshll.u32 [#allocation5], 4
      %s71 = int_to_ptr.vmem [resolvable:$true] %s70
      %s72 = sshll.u32 %s1, 4
      %s73 = int_to_ptr.hbm [resolvable:$true] %s72
      %75 = dma.vmem_to_hbm [thread:$0]  %s71, 256, %s73, [#allocation4]
    $region13: #{tpu_custom_call.1} parent=1 // pred_fallthru
      _
    // Predicated region
    $region14: #{tpu_custom_call.1} parent=1 // pred_check
      _
    $region15: #{tpu_custom_call.1} parent=1 // pred_check_branch
      %77 = sbr.rel (0) target = $region17
    $region16: #{tpu_custom_call.1} parent=1 // pred_region
      %79 = dma.done [#allocation4], 256
    $region17: #{tpu_custom_call.1} parent=1 // pred_fallthru
      _
    %80 = vsyncpa [#allocation3], 1
    %81 = vsyncpa [#allocation4], 1

</llo_original>
